<compile_context>
chip_gen: v7x
topology: tpu7x:2x2x1
jax: 0.10.0
libtpu: 0.0.40
codegen_flags: <defaults>
</compile_context>

<pallas_src>
from functools import partial

import jax
import jax.numpy as jnp
from jax.experimental import pallas as pl
from jax.experimental.pallas import tpu as pltpu

_LANE = 128


def _round_up(x: int, m: int) -> int:
    return ((x + m - 1) // m) * m


def _binary_tanh_kernel(x_ref, o_ref):
    x = x_ref[...]
    one = jnp.ones_like(x)
    # Sign-compare directly on x: bit-identical to binarize(tanh(x)).
    o_ref[...] = jnp.where(x >= 0, one, -one).astype(o_ref.dtype)


@partial(jax.jit, static_argnames=("tile_rows",))
def binary_tanh(x: jax.Array, *, tile_rows: int = 8192) -> jax.Array:
    """Elementwise BinaryTanh. Accepts any shape (e.g. NCHW); same shape/dtype out."""
    orig_shape = x.shape
    orig_dtype = x.dtype
    n = x.size

    itemsize = jnp.dtype(orig_dtype).itemsize
    sublane = max(8, 32 // itemsize)          # 8 (f32) / 16 (bf16) / 32 (int8)
    quantum = sublane * _LANE                 # packed (sublane, 128) tile quantum

    x_flat = jnp.ravel(x)                     # bitcast under jit
    n_main = (n // quantum) * quantum         # kernel-processed, aligned prefix
    rows = n_main // _LANE                    # always a multiple of `sublane`

    pieces = []

    if rows > 0:
        x2d = x_flat[:n_main].reshape(rows, _LANE)   # free, lane-dense view

        # Block size: big enough to amortize per-step overhead, but split into
        # >= 2 grid steps when possible so v7x megacore uses both TensorCores.
        tile_rows_r = max(sublane, (tile_rows // sublane) * sublane)
        half = _round_up(pl.cdiv(rows, 2), sublane)
        block_rows = min(rows, max(sublane, min(tile_rows_r, half)))

        # VMEM budget: 2x double-buffered (in + out) blocks, plus headroom.
        block_bytes = block_rows * _LANE * itemsize
        vmem_limit = max(4 * 1024 * 1024,
                         min(32 * 1024 * 1024, 4 * block_bytes + 2 * 1024 * 1024))

        out2d = pl.pallas_call(
            _binary_tanh_kernel,
            out_shape=jax.ShapeDtypeStruct((rows, _LANE), orig_dtype),
            grid_spec=pltpu.PrefetchScalarGridSpec(
                num_scalar_prefetch=0,
                grid=(pl.cdiv(rows, block_rows),),
                in_specs=[pl.BlockSpec((block_rows, _LANE), lambda i: (i, 0))],
                out_specs=pl.BlockSpec((block_rows, _LANE), lambda i: (i, 0)),
            ),
            compiler_params=pltpu.CompilerParams(
                dimension_semantics=("parallel",),
                vmem_limit_bytes=vmem_limit,
            ),
        )(x2d)
        pieces.append(out2d.reshape(-1))

    if n_main != n:
        # Tiny (< quantum elements) unaligned tail: plain XLA elementwise.
        tail = x_flat[n_main:]
        one_t = jnp.ones_like(tail)
        pieces.append(jnp.where(tail >= 0, one_t, -one_t).astype(orig_dtype))

    out_flat = pieces[0] if len(pieces) == 1 else jnp.concatenate(pieces)
    return out_flat.reshape(orig_shape)


if __name__ == "__main__":
    key = jax.random.PRNGKey(0)
    # NCHW input, small shapes: batch=2, channels=4, spatial=16x16
    x = jax.random.normal(key, (2, 4, 16, 16), dtype=jnp.float32)

    y = jax.block_until_ready(binary_tanh(x))

    # Reference check: binarize(tanh(x)) == where(x >= 0, 1, -1)
    y_ref = jnp.where(x >= 0, 1.0, -1.0).astype(x.dtype)
    assert y.shape == x.shape and y.dtype == x.dtype
    assert bool(jnp.all(y == y_ref))

    # Non-aligned size: exercises aligned-prefix kernel + jnp.where tail path.
    x2 = jax.random.normal(jax.random.PRNGKey(1), (3, 5, 7, 11), dtype=jnp.float32)
    y2 = jax.block_until_ready(binary_tanh(x2))
    y2_ref = jnp.where(x2 >= 0, 1.0, -1.0).astype(x2.dtype)
    assert y2.shape == x2.shape and bool(jnp.all(y2 == y2_ref))

    # bf16 input: exercises the dtype-aware (16,128) sublane quantum.
    x3 = jax.random.normal(jax.random.PRNGKey(2), (4, 8, 16, 16), dtype=jnp.bfloat16)
    y3 = jax.block_until_ready(binary_tanh(x3))
    y3_ref = jnp.where(x3 >= 0, 1.0, -1.0).astype(x3.dtype)
    assert y3.dtype == x3.dtype and bool(jnp.all(y3 == y3_ref))

    # TODO(synk): backward (straight-through estimator, grad_input = grad_output)
    # is an identity and is not implemented as a kernel here.
    print("KERNEL_OK")
</pallas_src>

<mosaic_0001>
module attributes {stable_mosaic.version = 11 : i64} {
  func.func @_binary_tanh_kernel(%arg0: i32, %arg1: memref<8x128xf32, #tpu.memory_space<vmem>>, %arg2: memref<8x128xf32, #tpu.memory_space<vmem>>) attributes {dimension_semantics = [#tpu.dimension_semantics<parallel>], iteration_bounds = array<i64: 2>, scalar_prefetch = 0 : i64, scratch_operands = 0 : i64, tpu.core_type = #tpu.core_type<tc>, window_params = [{transform_indices = @transform_0, window_bounds = array<i64: 8, 128>}, {transform_indices = @transform_1, window_bounds = array<i64: 8, 128>}]} {
    %c0 = arith.constant 0 : index
    %c0_0 = arith.constant 0 : index
    %0 = vector.load %arg1[%c0, %c0_0] : memref<8x128xf32, #tpu.memory_space<vmem>>, vector<8x128xf32>
    %cst = arith.constant 1.000000e+00 : f32
    %1 = vector.broadcast %cst : f32 to vector<8x128xf32>
    %cst_1 = arith.constant 0.000000e+00 : f32
    %2 = vector.broadcast %cst_1 : f32 to vector<8x128xf32>
    %3 = arith.cmpf oge, %0, %2 : vector<8x128xf32>
    %cst_2 = arith.constant 0.000000e+00 : f32
    %4 = vector.broadcast %cst_2 : f32 to vector<8x128xf32>
    %5 = arith.subf %4, %1 : vector<8x128xf32>
    %6 = arith.select %3, %1, %5 : vector<8x128xi1>, vector<8x128xf32>
    %c0_3 = arith.constant 0 : index
    %c0_4 = arith.constant 0 : index
    %7 = vector.load %arg2[%c0_3, %c0_4] : memref<8x128xf32, #tpu.memory_space<vmem>>, vector<8x128xf32>
    tpu.vector_store %arg2[%c0_3, %c0_4], %6 {strides = array<i32>} : memref<8x128xf32, #tpu.memory_space<vmem>>, vector<8x128xf32>,
    return
  }
  func.func @transform_0(%arg0: i32) -> (i32, i32) {
    %c0_i32 = arith.constant 0 : i32
    %c0_i32_0 = arith.constant 0 : i32
    return %arg0, %c0_i32 : i32, i32
  }
  func.func @transform_1(%arg0: i32) -> (i32, i32) {
    %c0_i32 = arith.constant 0 : i32
    %c0_i32_0 = arith.constant 0 : i32
    return %arg0, %c0_i32 : i32, i32
  }
}

</mosaic_0001>

<llo_original>
// kernel: binary_tanh.1
$region0: #{binary_tanh.1}
  #allocation0 [shape = 'u32[]', space=smem, size = 0x4, offset = 0x4, fixed_abs, tag = 'smem constant byte address 0x4 - core index']
  #allocation1 [shape = 'u32[144,128]{1,0:T(1,128)}', space=vmem, size = 0x12000, scoped, tag = 'internal scratch']
  %s0 = inlined_call_operand.vmem [shape: f32[16,128], index: 0, kind: input, shape index: {}]
  %s1 = inlined_call_operand.vmem [shape: f32[16,128], index: 1, kind: output, shape index: {}]
  %s2 = sld [smem:[#allocation0]]
  $region37: #{binary_tanh.1} parent=0
    _
  %s4 = ssub.s32 1, %s2
  %s5 = scalar_select 0, %s4, %s2
  loop: start=0, step=1, limit=4
  $region2: #{binary_tanh.1} parent=0 // loop_pre_header
    _
  $region3: #{binary_tanh.1} parent=0 // loop_header
    %s7 = sphi 0, %s11
    %p8 = scmp.ge.s32.totalorder %s7, 4
    %s17 = sphi 0, %s19
    %s20 = sphi 0, %s17
    %s21 = sphi 0, %s20
    %s37 = sphi 0, %s21
    %s43 = sphi 0, %s45
    %s46 = sphi 0, %s43
    %s47 = sphi 0, %s46
    %s63 = sphi 0, %s47
  $region4: #{binary_tanh.1} parent=0 // loop_header_branch
    %10 = sbr.rel (%p8) target = $region8
  $region5: #{binary_tanh.1} parent=0 // loop_body
    %s12 = ssub.s32 %s7, 1
    %s13 = ssub.s32 %s7, 2
    %s14 = sadd.s32 %s7, 1
    %s15 = ssub.s32 %s7, %s14
    %p16 = scmp.eq.s32.totalorder %s15, 0
    %s18 = sadd.s32 %s17, 1
    %s19 = scalar_select %p16, %s17, %s18
    %p22 = pneg %p16
    %p23 = scmp.eq.s32.totalorder %s7, 1
    %p24 = por %p22, %p23
    %p25 = scmp.ne.s32.totalorder %s17, %s20
    %p26 = scmp.eq.s32.totalorder %s7, 0
    %p27 = por %p25, %p26
    %p28 = scmp.ne.s32.totalorder %s17, %s20
    %p29 = scmp.eq.s32.totalorder %s12, 1
    %p30 = por %p28, %p29
    %p31 = scmp.ne.s32.totalorder %s20, %s21
    %p32 = scmp.eq.s32.totalorder %s12, 0
    %p33 = por %p31, %p32
    %p34 = scmp.ne.s32.totalorder %s20, %s21
    %p35 = scmp.eq.s32.totalorder %s13, 1
    %p36 = por %p34, %p35
    %p38 = scmp.ne.s32.totalorder %s21, %s37
    %p39 = scmp.eq.s32.totalorder %s13, 0
    %p40 = por %p38, %p39
    %s41 = ssub.s32 %s7, %s14
    %p42 = scmp.eq.s32.totalorder %s41, 0
    %s44 = sadd.s32 %s43, 1
    %s45 = scalar_select %p42, %s43, %s44
    %p48 = pneg %p42
    %p49 = scmp.eq.s32.totalorder %s7, 1
    %p50 = por %p48, %p49
    %p51 = scmp.ne.s32.totalorder %s43, %s46
    %p52 = scmp.eq.s32.totalorder %s7, 0
    %p53 = por %p51, %p52
    %p54 = scmp.ne.s32.totalorder %s43, %s46
    %p55 = scmp.eq.s32.totalorder %s12, 1
    %p56 = por %p54, %p55
    %p57 = scmp.ne.s32.totalorder %s46, %s47
    %p58 = scmp.eq.s32.totalorder %s12, 0
    %p59 = por %p57, %p58
    %p60 = scmp.ne.s32.totalorder %s46, %s47
    %p61 = scmp.eq.s32.totalorder %s13, 1
    %p62 = por %p60, %p61
    %p64 = scmp.ne.s32.totalorder %s47, %s63
    %p65 = scmp.eq.s32.totalorder %s13, 0
    %p66 = por %p64, %p65
    %p67 = scmp.le.s32.totalorder 1, %s7
    %p68 = scmp.lt.s32.totalorder %s7, 3
    %p69 = pnand %p67, %p68
    %p70 = pneg %p69
    // Predicated region
    $region9: #{binary_tanh.1} parent=5 // pred_check
      _
    $region10: #{binary_tanh.1} parent=5 // pred_check_branch
      %72 = sbr.rel (%p69) target = $region12
    $region11: #{binary_tanh.1} parent=5 // pred_region
      %s73 = ssub.s32 %s7, 1
    $region12: #{binary_tanh.1} parent=5 // pred_fallthru
      _
    %p74 = scmp.lt.s32.totalorder %s7, 2
    // Predicated region
    $region13: #{binary_tanh.1} parent=5 // pred_check
      %p75 = pneg %p74
    $region14: #{binary_tanh.1} parent=5 // pred_check_branch
      %77 = sbr.rel (%p75) target = $region16
    $region15: #{binary_tanh.1} parent=5 // pred_region
      // Predicated region
      $region17: #{binary_tanh.1} parent=15 // pred_check
        %p78 = pneg %p27
      $region18: #{binary_tanh.1} parent=15 // pred_check_branch
        %80 = sbr.rel (%p78) target = $region20
      $region19: #{binary_tanh.1} parent=15 // pred_region
        %p81 = scmp.lt.s32.totalorder %s7, 1
        %s82 = scalar_select %p81, %s7, 1
        %s83 = smul.addr %s82, 8
        %s84 = scalar_lea.vmem %s0, %s83
      $region20: #{binary_tanh.1} parent=15 // pred_fallthru
        _
    $region16: #{binary_tanh.1} parent=5 // pred_fallthru
      _
    %p85 = scmp.le.s32.totalorder 1, %s7
    %p86 = scmp.lt.s32.totalorder %s7, 3
    %p87 = pnand %p85, %p86
    %p88 = pneg %p87
    // Predicated region
    $region21: #{binary_tanh.1} parent=5 // pred_check
      _
    $region22: #{binary_tanh.1} parent=5 // pred_check_branch
      %90 = sbr.rel (%p87) target = $region24
    $region23: #{binary_tanh.1} parent=5 // pred_region
      %s91 = ssub.s32 %s7, 1
      %p92 = scmp.lt.s32.totalorder %s12, 1
      %s93 = scalar_select %p92, %s12, 1
      %s94 = smul.addr %s93, 8
      %s95 = scalar_lea.vmem %s0, %s94
      %p96 = pneg %p33
      %p97 = pneg %p30
      %p98 = pneg %p59
      %p99 = pneg %p56
      %p100 = scmp.lt.s32.totalorder %s12, 1
      %s101 = scalar_select %p100, %s12, 1
      %s102 = smul.addr %s101, 8
      %s103 = scalar_lea.vmem %s1, %s102
      %p104 = scmp.lt.s32.totalorder %s12, 1
      %s105 = scalar_select %p104, %s12, 1
      %s106 = smul.addr %s105, 8
      %s107 = scalar_lea.vmem %s0, %s106
      %p108 = scmp.lt.s32.totalorder %s12, 1
      %s109 = scalar_select %p108, %s12, 1
      %s110 = smul.addr %s109, 8
      %s111 = scalar_lea.vmem %s1, %s110
      %v112 = vld [vmem:[%s107] sm:$0xff]
      %vm113 = vcmp.ge.f32.partialorder %v112, 0.0
      %v114 = vsel %vm113, 1.0, -1.0
      %115 = vst [vmem:[%s111] sm:$0xff] %v114
      %p116 = scmp.lt.s32.totalorder %s12, 1
      %s117 = scalar_select %p116, %s12, 1
      %s118 = smul.addr %s117, 8
      %s119 = scalar_lea.vmem %s1, %s118
      // Predicated region
      $region25: #{binary_tanh.1} parent=23 // pred_check
        %p120 = pneg %p56
      $region26: #{binary_tanh.1} parent=23 // pred_check_branch
        %122 = sbr.rel (%p120) target = $region28
      $region27: #{binary_tanh.1} parent=23 // pred_region
        _
      $region28: #{binary_tanh.1} parent=23 // pred_fallthru
        _
    $region24: #{binary_tanh.1} parent=5 // pred_fallthru
      _
    %p123 = scmp.le.s32.totalorder 2, %s7
    // Predicated region
    $region29: #{binary_tanh.1} parent=5 // pred_check
      %p124 = pneg %p123
    $region30: #{binary_tanh.1} parent=5 // pred_check_branch
      %126 = sbr.rel (%p124) target = $region32
    $region31: #{binary_tanh.1} parent=5 // pred_region
      %s127 = ssub.s32 %s7, 2
      // Predicated region
      $region33: #{binary_tanh.1} parent=31 // pred_check
        %p128 = pneg %p62
      $region34: #{binary_tanh.1} parent=31 // pred_check_branch
        %130 = sbr.rel (%p128) target = $region36
      $region35: #{binary_tanh.1} parent=31 // pred_region
        %p131 = scmp.lt.s32.totalorder %s13, 1
        %s132 = scalar_select %p131, %s13, 1
        %s133 = smul.addr %s132, 8
        %s134 = scalar_lea.vmem %s1, %s133
      $region36: #{binary_tanh.1} parent=31 // pred_fallthru
        _
    $region32: #{binary_tanh.1} parent=5 // pred_fallthru
      _
  $region6: #{binary_tanh.1} parent=0 // loop_footer
    %s11 = sadd.s32 1, %s7
  $region7: #{binary_tanh.1} parent=0 // loop_footer_branch
    %6 = sbr.rel target = $region3
  $region8: #{binary_tanh.1} parent=0 // loop_exit
    _

</llo_original>
